<compile_context>
chip_gen: v5e
topology: v5e:2x2
jax: 0.10.0
libtpu: 0.0.40
codegen_flags: <defaults>
</compile_context>

<pallas_src>
import functools

import jax
import jax.numpy as jnp
from jax.experimental import pallas as pl
from jax.experimental.pallas import tpu as pltpu


def _reid_head_kernel(x_ref, wt_ref, b_ref, o_ref):
    # Linear: (TILE_N, D_in) @ (D_in, D_feat) + (1, D_feat)  -> MXU
    h = jnp.dot(x_ref[...], wt_ref[...], preferred_element_type=jnp.float32)
    # ReLU (VPU)
    h = jnp.maximum(h + b_ref[...], 0.0)
    # Row-wise L2 normalize, matching torch's `norms.clamp(min=1e-12)`:
    #   clamp(sum_sq, 1e-24) <=> clamp(norm, 1e-12); rsqrt rides the EUP slot,
    #   the per-element divide becomes a cheap multiply (VPU).
    sumsq = jnp.sum(h * h, axis=1, keepdims=True)       # XLU cross-lane reduce
    inv = jax.lax.rsqrt(jnp.maximum(sumsq, 1e-24))
    o_ref[...] = (h * inv).astype(o_ref.dtype)


def prepare_reid_head_params(weight, bias):
    """One-time param prep, hoisted out of the forward path.

    weight: (feat_dims, input_dims) torch-style Linear weight.
    bias:   (feat_dims,)
    Returns (wt, b2) with wt pre-transposed to (input_dims, feat_dims) and the
    bias reshaped to (1, feat_dims).  No feature padding: the kernel emits the
    native feature width directly.
    """
    wt = jnp.asarray(weight, jnp.float32).T            # (D_in, D_feat)
    b2 = jnp.asarray(bias, jnp.float32).reshape(1, -1)  # (1, D_feat)
    return wt, b2


def _round_up(v, m):
    return ((v + m - 1) // m) * m


@functools.partial(jax.jit, static_argnames=("tile_n",))
def reid_head_forward(x, wt, b2, *, tile_n=4096):
    """x: (N, input_dims) or (input_dims,); wt: (input_dims, D_feat); b2: (1, D_feat)."""
    # Single-sample case, like the PyTorch module's unsqueeze(0).
    if x.ndim == 1:
        x = x[None, :]
    x = x.astype(jnp.float32)
    n, input_dims = x.shape
    feat_dims = wt.shape[1]

    # Batch tile:
    #   * multiple of 8 sublanes,
    #   * no larger than requested,
    #   * capped at ~n/2 so the grid has >=2 steps for n > 8 (lets the
    #     "parallel" batch axis shard across v7x's 2 TensorCores; no-op on
    #     single-TC v5e/v6e).
    # VMEM note: the (tile_n, 32) x block lane-pads 32 -> 128 in VMEM (4x its
    # logical size); at tile_n=4096 the double-buffered x+out footprint is
    # ~8-10 MiB, inside v5e's 16 MiB scoped default.
    tn = max(8, min(tile_n, _round_up(pl.cdiv(n, 2), 8)))
    n_padded = _round_up(n, tn)
    n_pad = n_padded - n
    if n_pad:
        # Padded rows produce finite garbage (ReLU(bias) row-normalized) and
        # are sliced off below; all ops are row-wise so valid rows are safe.
        x = jnp.pad(x, ((0, n_pad), (0, 0)))
    grid = (n_padded // tn,)

    cost = pl.CostEstimate(
        flops=2 * n_padded * input_dims * feat_dims,
        transcendentals=n_padded,
        bytes_accessed=4 * (n_padded * input_dims            # x read
                            + input_dims * feat_dims         # weight read
                            + feat_dims                      # bias read
                            + n_padded * feat_dims),         # out write
    )

    out = pl.pallas_call(
        _reid_head_kernel,
        out_shape=jax.ShapeDtypeStruct((n_padded, feat_dims), jnp.float32),
        grid_spec=pltpu.PrefetchScalarGridSpec(
            num_scalar_prefetch=0,
            grid=grid,
            in_specs=[
                # x: tiled over the batch axis (double-buffered by Pallas).
                pl.BlockSpec((tn, input_dims), lambda i: (i, 0)),
                # weight / bias: constant index_map -> VMEM-resident across steps.
                pl.BlockSpec((input_dims, feat_dims), lambda i: (0, 0)),
                pl.BlockSpec((1, feat_dims), lambda i: (0, 0)),
            ],
            # Block last dim == full array dim (feat_dims), so no lane padding
            # is required; stores are masked but HBM writeback is minimal.
            out_specs=pl.BlockSpec((tn, feat_dims), lambda i: (i, 0)),
        ),
        compiler_params=pltpu.CompilerParams(
            dimension_semantics=("parallel",)),
        cost_estimate=cost,
    )(x, wt, b2)

    # Only slice if batch padding was actually added (identity otherwise).
    return out if n_pad == 0 else out[:n]


if __name__ == "__main__":
    key = jax.random.PRNGKey(0)
    kx, kw, kb = jax.random.split(key, 3)

    # Small shapes consistent with the module; N chosen NOT to be a multiple
    # of the test tile so batch padding + multi-step grid are exercised.
    n, input_dims, feat_dims = 50, 32, 64
    x = jax.random.normal(kx, (n, input_dims), dtype=jnp.float32)

    # nn.Linear default-init-style synthetic parameters.
    bound = 1.0 / (input_dims ** 0.5)
    weight = jax.random.uniform(kw, (feat_dims, input_dims),
                                minval=-bound, maxval=bound, dtype=jnp.float32)
    bias = jax.random.uniform(kb, (feat_dims,),
                              minval=-bound, maxval=bound, dtype=jnp.float32)

    # One-time param prep (transpose) hoisted out of forward.
    wt, b2 = prepare_reid_head_params(weight, bias)

    # Reference in plain JAX (same semantics as the PyTorch forward).
    ref = jnp.maximum(x @ weight.T + bias, 0.0)
    ref_norm = jnp.sqrt(jnp.sum(ref * ref, axis=1, keepdims=True))
    ref = ref / jnp.maximum(ref_norm, 1e-12)

    # Small tile to force a multi-step grid at this toy batch size.
    out = jax.block_until_ready(reid_head_forward(x, wt, b2, tile_n=16))
    assert out.shape == (n, feat_dims)
    assert bool(jnp.allclose(out, ref, atol=1e-5, rtol=1e-5))

    # Default (production) tile path: single clamp path, grid >= 2 for n > 8.
    out_def = jax.block_until_ready(reid_head_forward(x, wt, b2))
    assert out_def.shape == (n, feat_dims)
    assert bool(jnp.allclose(out_def, ref, atol=1e-5, rtol=1e-5))

    # Also exercise the 1-D single-sample path (unsqueeze semantics).
    out1 = jax.block_until_ready(reid_head_forward(x[0], wt, b2, tile_n=16))
    assert out1.shape == (1, feat_dims)
    assert bool(jnp.allclose(out1, ref[:1], atol=1e-5, rtol=1e-5))

    print("KERNEL_OK")
</pallas_src>

<mosaic_0001>
module attributes {stable_mosaic.version = 11 : i64} {
  func.func @_reid_head_kernel(%arg0: i32, %arg1: memref<16x32xf32, #tpu.memory_space<vmem>>, %arg2: memref<32x64xf32, #tpu.memory_space<vmem>>, %arg3: memref<1x64xf32, #tpu.memory_space<vmem>>, %arg4: memref<16x64xf32, #tpu.memory_space<vmem>>) attributes {dimension_semantics = [#tpu.dimension_semantics<parallel>], iteration_bounds = array<i64: 4>, scalar_prefetch = 0 : i64, scratch_operands = 0 : i64, tpu.core_type = #tpu.core_type<tc>, window_params = [{transform_indices = @transform_0, window_bounds = array<i64: 16, 32>}, {pipeline_mode = #tpu.pipeline_mode<synchronous>, transform_indices = @transform_1, window_bounds = array<i64: 32, 64>}, {pipeline_mode = #tpu.pipeline_mode<synchronous>, transform_indices = @transform_2, window_bounds = array<i64: 1, 64>}, {transform_indices = @transform_3, window_bounds = array<i64: 16, 64>}]} {
    %c0 = arith.constant 0 : index
    %c0_0 = arith.constant 0 : index
    %0 = vector.load %arg1[%c0, %c0_0] : memref<16x32xf32, #tpu.memory_space<vmem>>, vector<16x32xf32>
    %c0_1 = arith.constant 0 : index
    %c0_2 = arith.constant 0 : index
    %1 = vector.load %arg2[%c0_1, %c0_2] : memref<32x64xf32, #tpu.memory_space<vmem>>, vector<32x64xf32>
    %cst = arith.constant dense<0.000000e+00> : vector<16x64xf32>
    %2 = tpu.matmul %0, %1, %cst {dimension_numbers = #tpu.dot_dimension_numbers<[1], [0], [0], [1], [0, 0, 1, 1], [], []>} : vector<16x32xf32>, vector<32x64xf32>, vector<16x64xf32> -> vector<16x64xf32>
    %c0_3 = arith.constant 0 : index
    %c0_4 = arith.constant 0 : index
    %3 = vector.load %arg3[%c0_3, %c0_4] : memref<1x64xf32, #tpu.memory_space<vmem>>, vector<1x64xf32>
    %4 = vector.broadcast %3 : vector<1x64xf32> to vector<16x64xf32>
    %5 = arith.addf %2, %4 : vector<16x64xf32>
    %cst_5 = arith.constant 0.000000e+00 : f32
    %6 = vector.broadcast %cst_5 : f32 to vector<16x64xf32>
    %7 = arith.maximumf %5, %6 : vector<16x64xf32>
    %8 = arith.mulf %7, %7 : vector<16x64xf32>
    %cst_6 = arith.constant dense<0.000000e+00> : vector<16xf32>
    %9 = vector.multi_reduction <add>, %8, %cst_6 [1] : vector<16x64xf32> to vector<16xf32>
    %10 = vector.shape_cast %9 : vector<16xf32> to vector<16x1xf32>
    %cst_7 = arith.constant 1.000000e-24 : f32
    %11 = vector.broadcast %cst_7 : f32 to vector<16x1xf32>
    %12 = arith.maximumf %10, %11 : vector<16x1xf32>
    %13 = math.rsqrt %12 : vector<16x1xf32>
    %14 = vector.broadcast %13 : vector<16x1xf32> to vector<16x64xf32>
    %15 = arith.mulf %7, %14 : vector<16x64xf32>
    %c0_8 = arith.constant 0 : index
    %c0_9 = arith.constant 0 : index
    %16 = vector.load %arg4[%c0_8, %c0_9] : memref<16x64xf32, #tpu.memory_space<vmem>>, vector<16x64xf32>
    tpu.vector_store %arg4[%c0_8, %c0_9], %15 {strides = array<i32>} : memref<16x64xf32, #tpu.memory_space<vmem>>, vector<16x64xf32>,
    return
  }
  func.func @transform_0(%arg0: i32) -> (i32, i32) {
    %c0_i32 = arith.constant 0 : i32
    %c0_i32_0 = arith.constant 0 : i32
    return %arg0, %c0_i32 : i32, i32
  }
  func.func @transform_1(%arg0: i32) -> (i32, i32) {
    %c0_i32 = arith.constant 0 : i32
    %c0_i32_0 = arith.constant 0 : i32
    %c0_i32_1 = arith.constant 0 : i32
    return %c0_i32, %c0_i32_0 : i32, i32
  }
  func.func @transform_2(%arg0: i32) -> (i32, i32) {
    %c0_i32 = arith.constant 0 : i32
    %c0_i32_0 = arith.constant 0 : i32
    %c0_i32_1 = arith.constant 0 : i32
    return %c0_i32, %c0_i32_0 : i32, i32
  }
  func.func @transform_3(%arg0: i32) -> (i32, i32) {
    %c0_i32 = arith.constant 0 : i32
    %c0_i32_0 = arith.constant 0 : i32
    return %arg0, %c0_i32 : i32, i32
  }
}

</mosaic_0001>

<llo_original>
// kernel: reid_head_forward.1
$region0: #{reid_head_forward.1}
  #allocation0 [shape = 'u32[]', space=smem, size = 0x4, offset = 0x4, fixed_abs, tag = 'smem constant byte address 0x4 - core index']
  #allocation1 [shape = 'u32[72,128]{1,0:T(1,128)}', space=vmem, size = 0x9000, scoped, tag = 'internal scratch']
  %s0 = inlined_call_operand.vmem [shape: f32[64,32], index: 0, kind: input, shape index: {}]
  %s1 = inlined_call_operand.vmem [shape: f32[32,64], index: 1, kind: input, shape index: {}]
  %s2 = inlined_call_operand.vmem [shape: f32[1,64], index: 2, kind: input, shape index: {}]
  %s3 = inlined_call_operand.vmem [shape: f32[64,64], index: 3, kind: output, shape index: {}]
  %s4 = sld [smem:[#allocation0]]
  $region45: #{reid_head_forward.1} parent=0
    _
  %s6 = ssub.s32 1, %s4
  %s7 = scalar_select 0, %s6, %s4
  loop: start=0, step=1, limit=6
  $region2: #{reid_head_forward.1} parent=0 // loop_pre_header
    _
  $region3: #{reid_head_forward.1} parent=0 // loop_header
    %s9 = sphi 0, %s13
    %p10 = scmp.ge.s32.totalorder %s9, 6
    %s19 = sphi 0, %s21
    %s22 = sphi 0, %s19
    %s23 = sphi 0, %s22
    %s39 = sphi 0, %s23
    %s43 = sphi 0, %s43
    %s45 = sphi 0, %s43
    %s46 = sphi 0, %s45
    %s60 = sphi 0, %s46
    %s64 = sphi 0, %s64
    %s66 = sphi 0, %s64
    %s67 = sphi 0, %s66
    %s81 = sphi 0, %s67
    %s87 = sphi 0, %s89
    %s90 = sphi 0, %s87
    %s91 = sphi 0, %s90
    %s107 = sphi 0, %s91
  $region4: #{reid_head_forward.1} parent=0 // loop_header_branch
    %12 = sbr.rel (%p10) target = $region8
  $region5: #{reid_head_forward.1} parent=0 // loop_body
    %s14 = ssub.s32 %s9, 1
    %s15 = ssub.s32 %s9, 2
    %s16 = sadd.s32 %s9, 1
    %s17 = ssub.s32 %s9, %s16
    %p18 = scmp.eq.s32.totalorder %s17, 0
    %s20 = sadd.s32 %s19, 1
    %s21 = scalar_select %p18, %s19, %s20
    %p24 = pneg %p18
    %p25 = scmp.eq.s32.totalorder %s9, 3
    %p26 = por %p24, %p25
    %p27 = scmp.ne.s32.totalorder %s19, %s22
    %p28 = scmp.eq.s32.totalorder %s9, 0
    %p29 = por %p27, %p28
    %p30 = scmp.ne.s32.totalorder %s19, %s22
    %p31 = scmp.eq.s32.totalorder %s14, 3
    %p32 = por %p30, %p31
    %p33 = scmp.ne.s32.totalorder %s22, %s23
    %p34 = scmp.eq.s32.totalorder %s14, 0
    %p35 = por %p33, %p34
    %p36 = scmp.ne.s32.totalorder %s22, %s23
    %p37 = scmp.eq.s32.totalorder %s15, 3
    %p38 = por %p36, %p37
    %p40 = scmp.ne.s32.totalorder %s23, %s39
    %p41 = scmp.eq.s32.totalorder %s15, 0
    %p42 = por %p40, %p41
    %s44 = sadd.s32 %s43, 1
    %p47 = scmp.eq.s32.totalorder %s9, 3
    %p48 = scmp.ne.s32.totalorder %s43, %s45
    %p49 = scmp.eq.s32.totalorder %s9, 0
    %p50 = por %p48, %p49
    %p51 = scmp.ne.s32.totalorder %s43, %s45
    %p52 = scmp.eq.s32.totalorder %s14, 3
    %p53 = por %p51, %p52
    %p54 = scmp.ne.s32.totalorder %s45, %s46
    %p55 = scmp.eq.s32.totalorder %s14, 0
    %p56 = por %p54, %p55
    %p57 = scmp.ne.s32.totalorder %s45, %s46
    %p58 = scmp.eq.s32.totalorder %s15, 3
    %p59 = por %p57, %p58
    %p61 = scmp.ne.s32.totalorder %s46, %s60
    %p62 = scmp.eq.s32.totalorder %s15, 0
    %p63 = por %p61, %p62
    %s65 = sadd.s32 %s64, 1
    %p68 = scmp.eq.s32.totalorder %s9, 3
    %p69 = scmp.ne.s32.totalorder %s64, %s66
    %p70 = scmp.eq.s32.totalorder %s9, 0
    %p71 = por %p69, %p70
    %p72 = scmp.ne.s32.totalorder %s64, %s66
    %p73 = scmp.eq.s32.totalorder %s14, 3
    %p74 = por %p72, %p73
    %p75 = scmp.ne.s32.totalorder %s66, %s67
    %p76 = scmp.eq.s32.totalorder %s14, 0
    %p77 = por %p75, %p76
    %p78 = scmp.ne.s32.totalorder %s66, %s67
    %p79 = scmp.eq.s32.totalorder %s15, 3
    %p80 = por %p78, %p79
    %p82 = scmp.ne.s32.totalorder %s67, %s81
    %p83 = scmp.eq.s32.totalorder %s15, 0
    %p84 = por %p82, %p83
    %s85 = ssub.s32 %s9, %s16
    %p86 = scmp.eq.s32.totalorder %s85, 0
    %s88 = sadd.s32 %s87, 1
    %s89 = scalar_select %p86, %s87, %s88
    %p92 = pneg %p86
    %p93 = scmp.eq.s32.totalorder %s9, 3
    %p94 = por %p92, %p93
    %p95 = scmp.ne.s32.totalorder %s87, %s90
    %p96 = scmp.eq.s32.totalorder %s9, 0
    %p97 = por %p95, %p96
    %p98 = scmp.ne.s32.totalorder %s87, %s90
    %p99 = scmp.eq.s32.totalorder %s14, 3
    %p100 = por %p98, %p99
    %p101 = scmp.ne.s32.totalorder %s90, %s91
    %p102 = scmp.eq.s32.totalorder %s14, 0
    %p103 = por %p101, %p102
    %p104 = scmp.ne.s32.totalorder %s90, %s91
    %p105 = scmp.eq.s32.totalorder %s15, 3
    %p106 = por %p104, %p105
    %p108 = scmp.ne.s32.totalorder %s91, %s107
    %p109 = scmp.eq.s32.totalorder %s15, 0
    %p110 = por %p108, %p109
    %p111 = scmp.le.s32.totalorder 1, %s9
    %p112 = scmp.lt.s32.totalorder %s9, 5
    %p113 = pnand %p111, %p112
    %p114 = pneg %p113
    // Predicated region
    $region9: #{reid_head_forward.1} parent=5 // pred_check
      _
    $region10: #{reid_head_forward.1} parent=5 // pred_check_branch
      %116 = sbr.rel (%p113) target = $region12
    $region11: #{reid_head_forward.1} parent=5 // pred_region
      %s117 = ssub.s32 %s9, 1
      // Predicated region
      $region13: #{reid_head_forward.1} parent=11 // pred_check
        %p118 = pneg %p56
      $region14: #{reid_head_forward.1} parent=11 // pred_check_branch
        %120 = sbr.rel (%p118) target = $region16
      $region15: #{reid_head_forward.1} parent=11 // pred_region
        _
      $region16: #{reid_head_forward.1} parent=11 // pred_fallthru
        _
      // Predicated region
      $region17: #{reid_head_forward.1} parent=11 // pred_check
        %p121 = pneg %p77
      $region18: #{reid_head_forward.1} parent=11 // pred_check_branch
        %123 = sbr.rel (%p121) target = $region20
      $region19: #{reid_head_forward.1} parent=11 // pred_region
        _
      $region20: #{reid_head_forward.1} parent=11 // pred_fallthru
        _
    $region12: #{reid_head_forward.1} parent=5 // pred_fallthru
      _
    %p124 = scmp.lt.s32.totalorder %s9, 4
    // Predicated region
    $region21: #{reid_head_forward.1} parent=5 // pred_check
      %p125 = pneg %p124
    $region22: #{reid_head_forward.1} parent=5 // pred_check_branch
      %127 = sbr.rel (%p125) target = $region24
    $region23: #{reid_head_forward.1} parent=5 // pred_region
      // Predicated region
      $region25: #{reid_head_forward.1} parent=23 // pred_check
        %p128 = pneg %p29
      $region26: #{reid_head_forward.1} parent=23 // pred_check_branch
        %130 = sbr.rel (%p128) target = $region28
      $region27: #{reid_head_forward.1} parent=23 // pred_region
        %s131 = smul.u32 2, %s9
        %p132 = scmp.lt.s32.totalorder %s131, 7
        %s133 = scalar_select %p132, %s131, 7
        %s134 = smul.addr %s133, 8
        %s135 = scalar_lea.vmem %s0, %s134
        %s136 = smul.u32 2, %s9
      $region28: #{reid_head_forward.1} parent=23 // pred_fallthru
        _
    $region24: #{reid_head_forward.1} parent=5 // pred_fallthru
      _
    %p137 = scmp.le.s32.totalorder 1, %s9
    %p138 = scmp.lt.s32.totalorder %s9, 5
    %p139 = pnand %p137, %p138
    %p140 = pneg %p139
    // Predicated region
    $region29: #{reid_head_forward.1} parent=5 // pred_check
      _
    $region30: #{reid_head_forward.1} parent=5 // pred_check_branch
      %142 = sbr.rel (%p139) target = $region32
    $region31: #{reid_head_forward.1} parent=5 // pred_region
      %s143 = ssub.s32 %s9, 1
      %s144 = smul.u32 2, %s14
      %p145 = scmp.lt.s32.totalorder %s144, 7
      %s146 = scalar_select %p145, %s144, 7
      %s147 = smul.addr %s146, 8
      %s148 = scalar_lea.vmem %s0, %s147
      %p149 = pneg %p35
      %p150 = pneg %p32
      %p151 = pneg %p56
      %p152 = pneg %p53
      %p153 = pneg %p77
      %p154 = pneg %p74
      %p155 = pneg %p103
      %p156 = pneg %p100
      %s157 = smul.u32 2, %s14
      %p158 = scmp.lt.s32.totalorder %s157, 7
      %s159 = scalar_select %p158, %s157, 7
      %s160 = smul.addr %s159, 8
      %s161 = scalar_lea.vmem %s3, %s160
      %s162 = smul.u32 2, %s14
      %p163 = scmp.lt.s32.totalorder %s162, 7
      %s164 = scalar_select %p163, %s162, 7
      %s165 = smul.addr %s164, 8
      %s166 = scalar_lea.vmem %s0, %s165
      %s167 = smul.u32 2, %s14
      %s168 = smul.u32 2, %s14
      %p169 = scmp.lt.s32.totalorder %s168, 7
      %s170 = scalar_select %p169, %s168, 7
      %s171 = smul.addr %s170, 8
      %s172 = scalar_lea.vmem %s3, %s171
      %s173 = smul.u32 2, %s14
      %v174 = vld [vmem:[%s166] sm:$0xff]
      %v175 = vld [vmem:[%s166 + $0x8] sm:$0xff]
      %v176 = vld [vmem:[%s1] sm:$0xff]
      %v177 = vld [vmem:[%s1 + $0x8] sm:$0xff]
      %v178 = vld [vmem:[%s1 + $0x10] sm:$0xff]
      %v179 = vld [vmem:[%s1 + $0x18] sm:$0xff]
      %v180 = vld [vmem:[%s2] sm:$0x1]
      %v182 = vperm.slane %v180, 0
      %vm184 = vcmask 261120
      %v186 = vsel %vm184, %v174, 0
      %v189 = vsel %vm184, %v175, 0
      %191 = vmatpush.msra.mxu0 0.0
      %192 = vmatpush.msra.mxu0 0.0
      %193 = vmatpush.msra.mxu0 0.0
      %194 = vmatpush.msra.mxu0 0.0
      %195 = vmatpush.msra.mxu0 0.0
      %196 = vmatpush.msra.mxu0 0.0
      %197 = vmatpush.msra.mxu0 0.0
      %198 = vmatpush.msra.mxu0 0.0
      %199 = vmatpush.msra.mxu0 0.0
      %200 = vmatpush.msra.mxu0 0.0
      %201 = vmatpush.msra.mxu0 0.0
      %202 = vmatpush.msra.mxu0 0.0
      %203 = vmatpush.msra.mxu0 %v179
      %204 = vmatpush.msra.mxu0 %v178
      %205 = vmatpush.msra.mxu0 %v177
      %206 = vmatpush.msra.mxu0 %v176
      %207 = vmatmul.f32.gmra.mxu0 %v186
      %v208 = vpop.f32.mrf.mxu0
      %v209 = vadd.f32 %v182, %v208
      %210 = vmatmul.f32.gmra.mxu0 %v189
      %v211 = vpop.f32.mrf.mxu0
      %v212 = vadd.f32 %v182, %v211
      %213 = vdwg.mxu0
      %v214 = vmax.f32 %v209, 0.0
      %v215 = vmax.f32 %v212, 0.0
      %v216 = vmul.f32 %v214, %v214
      %v217 = vmul.f32 %v215, %v215
      %vm218 = vcmask 523264
      %v219 = vsel %vm218, %v216, 0.0
      %220 = vadd.xlane.f32.xlu0 %v219
      %v221 = vpop.xlane.xlu0 %220
      %v222 = vsel %vm218, %v217, 0.0
      %223 = vadd.xlane.f32.xlu0 %v222
      %v224 = vpop.xlane.xlu0 %223
      %v225 = vmax.f32 %v221, 1e-24
      %v226 = vmax.f32 %v224, 1e-24
      %v227 = vrsqrt.pop %v225
      %v228 = vmul.f32 %v227, %v225
      %v229 = vmul.f32 %v228, %v227
      %v230 = vmul.f32 0.5, %v229
      %v231 = vsub.f32 1.5, %v230
      %v232 = vmul.f32 %v227, %v231
      %vm233 = vweird.f32 %v225
      %vm234 = vweird.f32 %v227
      %vm235 = vmor %vm233, %vm234
      %v236 = vsel %vm235, %v227, %v232
      %v237 = vrsqrt.pop %v226
      %v238 = vmul.f32 %v237, %v226
      %v239 = vmul.f32 %v238, %v237
      %v240 = vmul.f32 0.5, %v239
      %v241 = vsub.f32 1.5, %v240
      %v242 = vmul.f32 %v237, %v241
      %vm243 = vweird.f32 %v226
      %vm244 = vweird.f32 %v237
      %vm245 = vmor %vm243, %vm244
      %v246 = vsel %vm245, %v237, %v242
      %v247 = vmul.f32 %v214, %v236
      %v248 = vmul.f32 %v215, %v246
      %249 = vst.msk [vmem:[%s172] sm:$0xff] %vm218, %v247
      %250 = vst.msk [vmem:[%s172 + $0x8] sm:$0xff] %vm218, %v248
      %s251 = smul.u32 2, %s14
      %p252 = scmp.lt.s32.totalorder %s251, 7
      %s253 = scalar_select %p252, %s251, 7
      %s254 = smul.addr %s253, 8
      %s255 = scalar_lea.vmem %s3, %s254
      // Predicated region
      $region33: #{reid_head_forward.1} parent=31 // pred_check
        %p256 = pneg %p100
      $region34: #{reid_head_forward.1} parent=31 // pred_check_branch
        %258 = sbr.rel (%p256) target = $region36
      $region35: #{reid_head_forward.1} parent=31 // pred_region
        %s259 = smul.u32 2, %s14
      $region36: #{reid_head_forward.1} parent=31 // pred_fallthru
        _
    $region32: #{reid_head_forward.1} parent=5 // pred_fallthru
      _
    %p260 = scmp.le.s32.totalorder 2, %s9
    // Predicated region
    $region37: #{reid_head_forward.1} parent=5 // pred_check
      %p261 = pneg %p260
    $region38: #{reid_head_forward.1} parent=5 // pred_check_branch
      %263 = sbr.rel (%p261) target = $region40
    $region39: #{reid_head_forward.1} parent=5 // pred_region
      %s264 = ssub.s32 %s9, 2
      // Predicated region
      $region41: #{reid_head_forward.1} parent=39 // pred_check
        %p265 = pneg %p106
      $region42: #{reid_head_forward.1} parent=39 // pred_check_branch
        %267 = sbr.rel (%p265) target = $region44
      $region43: #{reid_head_forward.1} parent=39 // pred_region
        %s268 = smul.u32 2, %s15
        %p269 = scmp.lt.s32.totalorder %s268, 7
        %s270 = scalar_select %p269, %s268, 7
        %s271 = smul.addr %s270, 8
        %s272 = scalar_lea.vmem %s3, %s271
      $region44: #{reid_head_forward.1} parent=39 // pred_fallthru
        _
    $region40: #{reid_head_forward.1} parent=5 // pred_fallthru
      _
  $region6: #{reid_head_forward.1} parent=0 // loop_footer
    %s13 = sadd.s32 1, %s9
  $region7: #{reid_head_forward.1} parent=0 // loop_footer_branch
    %8 = sbr.rel target = $region3
  $region8: #{reid_head_forward.1} parent=0 // loop_exit
    _

</llo_original>
